<compile_context>
chip_gen: v6e
topology: v6e:2x2x1
jax: 0.10.0
libtpu: 0.0.40
codegen_flags: <defaults>
</compile_context>

<pallas_src>
import functools

import jax
import jax.numpy as jnp
from jax import lax
from jax.experimental import pallas as pl
from jax.experimental.pallas import tpu as pltpu

_HID = 64           # logical hidden width (fixed by the module)
_SEG = 64           # lanes per packed batch row (hidden / output segment width)
_LANES = 2 * _SEG   # 128: two batch rows per vreg row, lane-dense
_TR_MAX = 4096      # max packed rows per grid step (= 8192 logical rows)
_NEG = -1e30        # padded-logit bias so exp(padded) == 0


def _cdiv(a, b):
    return -(-a // b)


def _round_up(x, m):
    return _cdiv(x, m) * m


def _mlp_kernel(x_ref, w1_ref, b1_ref, w2_ref, b2_ref, w3_ref, b3_ref, o_ref):
    x = x_ref[...]

    # layer1 + sigmoid  (block-diagonal weights: lanes 0:64 = row 2i, 64:128 = row 2i+1)
    h1 = jnp.dot(x.astype(w1_ref.dtype), w1_ref[...],
                 preferred_element_type=jnp.float32) + b1_ref[...]
    h1 = jax.nn.sigmoid(h1)

    # layer2 + sigmoid
    h2 = jnp.dot(h1.astype(w2_ref.dtype), w2_ref[...],
                 preferred_element_type=jnp.float32) + b2_ref[...]
    h2 = jax.nn.sigmoid(h2)

    # layer3 logits.  Padded output lanes carry a -1e30 bias -> exp() == 0.
    logits = jnp.dot(h2.astype(w3_ref.dtype), w3_ref[...],
                     preferred_element_type=jnp.float32) + b3_ref[...]

    # No max-stabilization: real logits are bounded (|h2|<=1, |w3|,|b3|<=1/8 ->
    # |logit| <= ~8.2), so exp() cannot overflow; padded lanes underflow to 0.
    e = jnp.exp(logits)

    # Segmented softmax over the two 64-lane halves (one packed batch row each).
    lane = lax.broadcasted_iota(jnp.int32, e.shape, 1)
    left = lane < _SEG
    s_l = jnp.sum(jnp.where(left, e, 0.0), axis=-1, keepdims=True)
    s_r = jnp.sum(jnp.where(left, 0.0, e), axis=-1, keepdims=True)
    denom = jnp.where(left, s_l, s_r)

    # Exact normalization (fixes previous approx-reciprocal row-sum failure).
    o_ref[...] = (e / denom).astype(o_ref.dtype)


def init_params(key, in_dim, out_dim, hidden=_HID):
    """PyTorch-Linear-style init: U(-1/sqrt(fan_in), 1/sqrt(fan_in)). Logical f32 shapes."""
    ks = jax.random.split(key, 6)

    def linear(kw, kb, fan_in, fan_out):
        bound = 1.0 / jnp.sqrt(jnp.float32(fan_in))
        w = jax.random.uniform(kw, (fan_in, fan_out), jnp.float32, -bound, bound)
        b = jax.random.uniform(kb, (1, fan_out), jnp.float32, -bound, bound)
        return w, b

    w1, b1 = linear(ks[0], ks[1], in_dim, hidden)
    w2, b2 = linear(ks[2], ks[3], hidden, hidden)
    w3, b3 = linear(ks[4], ks[5], hidden, out_dim)
    return w1, b1, w2, b2, w3, b3


def pack_params(w1, b1, w2, b2, w3, b3, mxu_dtype=jnp.bfloat16):
    """Build block-diagonal, 128-lane-padded weights for the 2-rows-per-vreg layout.

    Segment 0 (lanes 0:64) processes batch row 2i, segment 1 (lanes 64:128) row 2i+1.
    Padded logit lanes get bias -1e30 so exp()==0 and the softmax is unaffected.
    Weights are bf16 (MXU inputs); biases stay f32.
    """
    in_dim, h = w1.shape
    out_dim = w3.shape[1]
    assert h == _HID, "module fixes hidden width at 64"
    assert out_dim <= _SEG, "packed layout requires prod(out_dim) <= 64"

    w1p = (jnp.zeros((2 * in_dim, _LANES), jnp.float32)
           .at[:in_dim, :h].set(w1)
           .at[in_dim:, h:].set(w1)).astype(mxu_dtype)
    b1p = jnp.concatenate([b1, b1], axis=-1)

    w2p = (jnp.zeros((_LANES, _LANES), jnp.float32)
           .at[:h, :h].set(w2)
           .at[h:, h:].set(w2)).astype(mxu_dtype)
    b2p = jnp.concatenate([b2, b2], axis=-1)

    w3p = (jnp.zeros((_LANES, _LANES), jnp.float32)
           .at[:h, :out_dim].set(w3)
           .at[h:, _SEG:_SEG + out_dim].set(w3)).astype(mxu_dtype)
    b3seg = jnp.full((1, _SEG), _NEG, jnp.float32).at[:, :out_dim].set(b3)
    b3p = jnp.concatenate([b3seg, b3seg], axis=-1)

    return (w1p, b1p, w2p, b2p, w3p, b3p)


@functools.partial(jax.jit, static_argnames=("out_dim", "out_dtype"))
def feedforward_nn(obs, packed, out_dim, out_dtype=jnp.bfloat16):
    """obs: [batch, in_dim] float32. Returns softmax probabilities [batch, out_dim] (bf16)."""
    batch, in_dim = obs.shape
    w1p, b1p, w2p, b2p, w3p, b3p = packed

    # Two logical batch rows per packed (128-lane) kernel row.
    rows = _cdiv(batch, 2)
    steps = _cdiv(rows, _TR_MAX)
    if rows >= 16:
        steps = max(steps, 2)   # v7x: >=2 grid steps so the "parallel" axis spans both TCs
    tr = _round_up(_cdiv(rows, steps), 8)   # padding-minimizing tile, multiple of 8 sublanes
    rows_pad = tr * steps
    batch_pad = 2 * rows_pad
    if batch_pad != batch:
        obs = jnp.pad(obs, ((0, batch_pad - batch), (0, 0)))
    x = obs.reshape(rows_pad, 2 * in_dim)   # contiguous -> free reshape

    weight_bytes = sum(int(a.size) * a.dtype.itemsize for a in packed)
    cost = pl.CostEstimate(
        flops=2 * rows_pad * (2 * in_dim * _LANES + 2 * _LANES * _LANES),
        transcendentals=rows_pad * 3 * _LANES,
        bytes_accessed=(int(x.size) * 4
                        + rows_pad * _LANES * jnp.dtype(out_dtype).itemsize
                        + weight_bytes),
    )

    out = pl.pallas_call(
        _mlp_kernel,
        out_shape=jax.ShapeDtypeStruct((rows_pad, _LANES), out_dtype),
        grid=(steps,),
        in_specs=[
            pl.BlockSpec((tr, 2 * in_dim), lambda i: (i, 0)),     # packed obs: tiled over batch
            pl.BlockSpec((2 * in_dim, _LANES), lambda i: (0, 0)),  # w1 (block-diag): resident
            pl.BlockSpec((1, _LANES), lambda i: (0, 0)),           # b1: resident
            pl.BlockSpec((_LANES, _LANES), lambda i: (0, 0)),      # w2 (block-diag): resident
            pl.BlockSpec((1, _LANES), lambda i: (0, 0)),           # b2: resident
            pl.BlockSpec((_LANES, _LANES), lambda i: (0, 0)),      # w3 (block-diag): resident
            pl.BlockSpec((1, _LANES), lambda i: (0, 0)),           # b3: resident (-1e30 pad)
        ],
        out_specs=pl.BlockSpec((tr, _LANES), lambda i: (i, 0)),
        compiler_params=pltpu.CompilerParams(
            dimension_semantics=("parallel",),
            vmem_limit_bytes=48 * 1024 * 1024),
        cost_estimate=cost,
    )(x, w1p, b1p, w2p, b2p, w3p, b3p)

    # (rows_pad, 128) -> (2*rows_pad, 64) is layout-preserving (free reshape);
    # the final slice only reads real rows / out_dim lanes (tiny vs old padded f32 copy).
    return out.reshape(batch_pad, _SEG)[:batch, :out_dim]


if __name__ == "__main__":
    key = jax.random.PRNGKey(0)
    k_obs, k_params = jax.random.split(key)

    batch = 2
    in_dim = 8     # corresponds to len(in_dim) in the PyTorch module
    out_dim = 4    # corresponds to np.prod(out_dim)

    obs = jax.random.normal(k_obs, (batch, in_dim), dtype=jnp.float32)
    w1, b1, w2, b2, w3, b3 = init_params(k_params, in_dim, out_dim)
    packed = pack_params(w1, b1, w2, b2, w3, b3)

    out = feedforward_nn(obs, packed, out_dim)
    out = jax.block_until_ready(out)

    # Plain-JAX f32 reference (kernel uses bf16 MXU inputs and a bf16 output,
    # so compare with correspondingly loose tolerances).
    h1 = jax.nn.sigmoid(obs @ w1 + b1)
    h2 = jax.nn.sigmoid(h1 @ w2 + b2)
    ref = jax.nn.softmax(h2 @ w3 + b3, axis=-1)

    out_f32 = out.astype(jnp.float32)
    assert out.shape == (batch, out_dim)
    assert jnp.allclose(jnp.sum(out_f32, axis=-1), 1.0, atol=1e-2), "softmax rows don't sum to 1"
    assert jnp.allclose(out_f32, ref, atol=2e-2), "mismatch vs reference"

    print("KERNEL_OK")
</pallas_src>

<mosaic_0001>
module attributes {stable_mosaic.version = 11 : i64} {
  func.func @_mlp_kernel(%arg0: i32, %arg1: memref<8x16xf32, #tpu.memory_space<vmem>>, %arg2: memref<16x128xbf16, #tpu.memory_space<vmem>>, %arg3: memref<1x128xf32, #tpu.memory_space<vmem>>, %arg4: memref<128x128xbf16, #tpu.memory_space<vmem>>, %arg5: memref<1x128xf32, #tpu.memory_space<vmem>>, %arg6: memref<128x128xbf16, #tpu.memory_space<vmem>>, %arg7: memref<1x128xf32, #tpu.memory_space<vmem>>, %arg8: memref<8x128xbf16, #tpu.memory_space<vmem>>) attributes {dimension_semantics = [#tpu.dimension_semantics<parallel>], iteration_bounds = array<i64: 1>, scalar_prefetch = 0 : i64, scratch_operands = 0 : i64, tpu.core_type = #tpu.core_type<tc>, window_params = [{transform_indices = @transform_0, window_bounds = array<i64: 8, 16>}, {pipeline_mode = #tpu.pipeline_mode<synchronous>, transform_indices = @transform_1, window_bounds = array<i64: 16, 128>}, {pipeline_mode = #tpu.pipeline_mode<synchronous>, transform_indices = @transform_2, window_bounds = array<i64: 1, 128>}, {pipeline_mode = #tpu.pipeline_mode<synchronous>, transform_indices = @transform_3, window_bounds = array<i64: 128, 128>}, {pipeline_mode = #tpu.pipeline_mode<synchronous>, transform_indices = @transform_4, window_bounds = array<i64: 1, 128>}, {pipeline_mode = #tpu.pipeline_mode<synchronous>, transform_indices = @transform_5, window_bounds = array<i64: 128, 128>}, {pipeline_mode = #tpu.pipeline_mode<synchronous>, transform_indices = @transform_6, window_bounds = array<i64: 1, 128>}, {transform_indices = @transform_7, window_bounds = array<i64: 8, 128>}]} {
    %c0 = arith.constant 0 : index
    %c0_0 = arith.constant 0 : index
    %0 = vector.load %arg1[%c0, %c0_0] : memref<8x16xf32, #tpu.memory_space<vmem>>, vector<8x16xf32>
    %1 = arith.truncf %0 : vector<8x16xf32> to vector<8x16xbf16>
    %c0_1 = arith.constant 0 : index
    %c0_2 = arith.constant 0 : index
    %2 = vector.load %arg2[%c0_1, %c0_2] : memref<16x128xbf16, #tpu.memory_space<vmem>>, vector<16x128xbf16>
    %cst = arith.constant dense<0.000000e+00> : vector<8x128xf32>
    %3 = tpu.matmul %1, %2, %cst {dimension_numbers = #tpu.dot_dimension_numbers<[1], [0], [0], [1], [0, 0, 1, 1], [], []>} : vector<8x16xbf16>, vector<16x128xbf16>, vector<8x128xf32> -> vector<8x128xf32>
    %c0_3 = arith.constant 0 : index
    %c0_4 = arith.constant 0 : index
    %4 = vector.load %arg3[%c0_3, %c0_4] : memref<1x128xf32, #tpu.memory_space<vmem>>, vector<1x128xf32>
    %5 = vector.broadcast %4 : vector<1x128xf32> to vector<8x128xf32>
    %6 = arith.addf %3, %5 : vector<8x128xf32>
    %7 = arith.negf %6 : vector<8x128xf32>
    %8 = math.exp %7 : vector<8x128xf32>
    %cst_5 = arith.constant 1.000000e+00 : f32
    %9 = vector.broadcast %cst_5 : f32 to vector<8x128xf32>
    %10 = arith.addf %9, %8 : vector<8x128xf32>
    %11 = arith.divf %9, %10 : vector<8x128xf32>
    %12 = arith.truncf %11 : vector<8x128xf32> to vector<8x128xbf16>
    %c0_6 = arith.constant 0 : index
    %c0_7 = arith.constant 0 : index
    %13 = vector.load %arg4[%c0_6, %c0_7] : memref<128x128xbf16, #tpu.memory_space<vmem>>, vector<128x128xbf16>
    %cst_8 = arith.constant dense<0.000000e+00> : vector<8x128xf32>
    %14 = tpu.matmul %12, %13, %cst_8 {dimension_numbers = #tpu.dot_dimension_numbers<[1], [0], [0], [1], [0, 0, 1, 1], [], []>} : vector<8x128xbf16>, vector<128x128xbf16>, vector<8x128xf32> -> vector<8x128xf32>
    %c0_9 = arith.constant 0 : index
    %c0_10 = arith.constant 0 : index
    %15 = vector.load %arg5[%c0_9, %c0_10] : memref<1x128xf32, #tpu.memory_space<vmem>>, vector<1x128xf32>
    %16 = vector.broadcast %15 : vector<1x128xf32> to vector<8x128xf32>
    %17 = arith.addf %14, %16 : vector<8x128xf32>
    %18 = arith.negf %17 : vector<8x128xf32>
    %19 = math.exp %18 : vector<8x128xf32>
    %cst_11 = arith.constant 1.000000e+00 : f32
    %20 = vector.broadcast %cst_11 : f32 to vector<8x128xf32>
    %21 = arith.addf %20, %19 : vector<8x128xf32>
    %22 = arith.divf %20, %21 : vector<8x128xf32>
    %23 = arith.truncf %22 : vector<8x128xf32> to vector<8x128xbf16>
    %c0_12 = arith.constant 0 : index
    %c0_13 = arith.constant 0 : index
    %24 = vector.load %arg6[%c0_12, %c0_13] : memref<128x128xbf16, #tpu.memory_space<vmem>>, vector<128x128xbf16>
    %cst_14 = arith.constant dense<0.000000e+00> : vector<8x128xf32>
    %25 = tpu.matmul %23, %24, %cst_14 {dimension_numbers = #tpu.dot_dimension_numbers<[1], [0], [0], [1], [0, 0, 1, 1], [], []>} : vector<8x128xbf16>, vector<128x128xbf16>, vector<8x128xf32> -> vector<8x128xf32>
    %c0_15 = arith.constant 0 : index
    %c0_16 = arith.constant 0 : index
    %26 = vector.load %arg7[%c0_15, %c0_16] : memref<1x128xf32, #tpu.memory_space<vmem>>, vector<1x128xf32>
    %27 = vector.broadcast %26 : vector<1x128xf32> to vector<8x128xf32>
    %28 = arith.addf %25, %27 : vector<8x128xf32>
    %29 = math.exp %28 : vector<8x128xf32>
    %30 = tpu.iota {dimensions = array<i32: 1>} : vector<8x128xi32>
    %c64_i32 = arith.constant 64 : i32
    %31 = vector.broadcast %c64_i32 : i32 to vector<8x128xi32>
    %32 = arith.cmpi slt, %30, %31 : vector<8x128xi32>
    %cst_17 = arith.constant 0.000000e+00 : f32
    %33 = vector.broadcast %cst_17 : f32 to vector<8x128xf32>
    %34 = arith.select %32, %29, %33 : vector<8x128xi1>, vector<8x128xf32>
    %cst_18 = arith.constant dense<0.000000e+00> : vector<8xf32>
    %35 = vector.multi_reduction <add>, %34, %cst_18 [1] : vector<8x128xf32> to vector<8xf32>
    %36 = vector.shape_cast %35 : vector<8xf32> to vector<8x1xf32>
    %cst_19 = arith.constant 0.000000e+00 : f32
    %37 = vector.broadcast %cst_19 : f32 to vector<8x128xf32>
    %38 = arith.select %32, %37, %29 : vector<8x128xi1>, vector<8x128xf32>
    %cst_20 = arith.constant dense<0.000000e+00> : vector<8xf32>
    %39 = vector.multi_reduction <add>, %38, %cst_20 [1] : vector<8x128xf32> to vector<8xf32>
    %40 = vector.shape_cast %39 : vector<8xf32> to vector<8x1xf32>
    %41 = vector.shape_cast %36 : vector<8x1xf32> to vector<8x1xf32>
    %42 = vector.broadcast %41 : vector<8x1xf32> to vector<8x128xf32>
    %43 = vector.shape_cast %40 : vector<8x1xf32> to vector<8x1xf32>
    %44 = vector.broadcast %43 : vector<8x1xf32> to vector<8x128xf32>
    %45 = arith.select %32, %42, %44 : vector<8x128xi1>, vector<8x128xf32>
    %46 = arith.divf %29, %45 : vector<8x128xf32>
    %47 = arith.truncf %46 : vector<8x128xf32> to vector<8x128xbf16>
    %c0_21 = arith.constant 0 : index
    %c0_22 = arith.constant 0 : index
    %48 = vector.load %arg8[%c0_21, %c0_22] : memref<8x128xbf16, #tpu.memory_space<vmem>>, vector<8x128xbf16>
    tpu.vector_store %arg8[%c0_21, %c0_22], %47 {strides = array<i32>} : memref<8x128xbf16, #tpu.memory_space<vmem>>, vector<8x128xbf16>,
    return
  }
  func.func @transform_0(%arg0: i32) -> (i32, i32) {
    %c0_i32 = arith.constant 0 : i32
    %c0_i32_0 = arith.constant 0 : i32
    return %arg0, %c0_i32 : i32, i32
  }
  func.func @transform_1(%arg0: i32) -> (i32, i32) {
    %c0_i32 = arith.constant 0 : i32
    %c0_i32_0 = arith.constant 0 : i32
    %c0_i32_1 = arith.constant 0 : i32
    return %c0_i32, %c0_i32_0 : i32, i32
  }
  func.func @transform_2(%arg0: i32) -> (i32, i32) {
    %c0_i32 = arith.constant 0 : i32
    %c0_i32_0 = arith.constant 0 : i32
    %c0_i32_1 = arith.constant 0 : i32
    return %c0_i32, %c0_i32_0 : i32, i32
  }
  func.func @transform_3(%arg0: i32) -> (i32, i32) {
    %c0_i32 = arith.constant 0 : i32
    %c0_i32_0 = arith.constant 0 : i32
    %c0_i32_1 = arith.constant 0 : i32
    return %c0_i32, %c0_i32_0 : i32, i32
  }
  func.func @transform_4(%arg0: i32) -> (i32, i32) {
    %c0_i32 = arith.constant 0 : i32
    %c0_i32_0 = arith.constant 0 : i32
    %c0_i32_1 = arith.constant 0 : i32
    return %c0_i32, %c0_i32_0 : i32, i32
  }
  func.func @transform_5(%arg0: i32) -> (i32, i32) {
    %c0_i32 = arith.constant 0 : i32
    %c0_i32_0 = arith.constant 0 : i32
    %c0_i32_1 = arith.constant 0 : i32
    return %c0_i32, %c0_i32_0 : i32, i32
  }
  func.func @transform_6(%arg0: i32) -> (i32, i32) {
    %c0_i32 = arith.constant 0 : i32
    %c0_i32_0 = arith.constant 0 : i32
    %c0_i32_1 = arith.constant 0 : i32
    return %c0_i32, %c0_i32_0 : i32, i32
  }
  func.func @transform_7(%arg0: i32) -> (i32, i32) {
    %c0_i32 = arith.constant 0 : i32
    %c0_i32_0 = arith.constant 0 : i32
    return %arg0, %c0_i32 : i32, i32
  }
}

</mosaic_0001>

<llo_original>
// kernel: feedforward_nn.1
$region0: #{feedforward_nn.1}
  #allocation0 [shape = 'u32[]', space=smem, size = 0x4, offset = 0x4, fixed_abs, tag = 'smem constant byte address 0x4 - core index']
  #allocation1 [shape = 'u32[144,128]{1,0:T(1,128)}', space=vmem, size = 0x12000, scoped, tag = 'internal scratch']
  %s0 = inlined_call_operand.vmem [shape: f32[8,16], index: 0, kind: input, shape index: {}]
  %s1 = inlined_call_operand.vmem [shape: bf16[16,128], index: 1, kind: input, shape index: {}]
  %s2 = inlined_call_operand.vmem [shape: f32[1,128], index: 2, kind: input, shape index: {}]
  %s3 = inlined_call_operand.hbm [shape: bf16[128,128], index: 3, kind: input, shape index: {}]
  %s4 = inlined_call_operand.vmem [shape: f32[1,128], index: 4, kind: input, shape index: {}]
  %s5 = inlined_call_operand.hbm [shape: bf16[128,128], index: 5, kind: input, shape index: {}]
  %s6 = inlined_call_operand.vmem [shape: f32[1,128], index: 6, kind: input, shape index: {}]
  %s7 = inlined_call_operand.vmem [shape: bf16[8,128], index: 7, kind: output, shape index: {}]
  %s8 = sld [smem:[#allocation0]]
  $region46: #{feedforward_nn.1} parent=0
    _
  %s10 = ssub.s32 1, %s8
  %s11 = scalar_select 0, %s10, %s8
  $region1: #{feedforward_nn.1} parent=0
    #allocation2 [shape = 'u8[32768]{0}', space=vmem, size = 0x8000, scoped, tag = 'input window, operand 3, single buffered']
    #allocation3 [shape = 's32[1]{0}', space=sflag, size = 0x4, scoped, tag = 'scoped memory for feedforward_nn.1']
    #allocation4 [shape = 'u8[32768]{0}', space=vmem, size = 0x8000, scoped, tag = 'input window, operand 5, single buffered']
    #allocation5 [shape = 's32[1]{0}', space=sflag, size = 0x4, scoped, tag = 'scoped memory for feedforward_nn.1']
    %12 = vsyncpa [#allocation3], 0
    %13 = vsyncpa [#allocation5], 0
    // Predicated region
    $region2: #{feedforward_nn.1} parent=1 // pred_check
      _
    $region3: #{feedforward_nn.1} parent=1 // pred_check_branch
      %15 = sbr.rel (0) target = $region5
    $region4: #{feedforward_nn.1} parent=1 // pred_region
      _
    $region5: #{feedforward_nn.1} parent=1 // pred_fallthru
      _
    // Predicated region
    $region6: #{feedforward_nn.1} parent=1 // pred_check
      _
    $region7: #{feedforward_nn.1} parent=1 // pred_check_branch
      %17 = sbr.rel (0) target = $region9
    $region8: #{feedforward_nn.1} parent=1 // pred_region
      _
    $region9: #{feedforward_nn.1} parent=1 // pred_fallthru
      _
    // Predicated region
    $region10: #{feedforward_nn.1} parent=1 // pred_check
      _
    $region11: #{feedforward_nn.1} parent=1 // pred_check_branch
      %19 = sbr.rel (0) target = $region13
    $region12: #{feedforward_nn.1} parent=1 // pred_region
      _
    $region13: #{feedforward_nn.1} parent=1 // pred_fallthru
      _
    // Predicated region
    $region14: #{feedforward_nn.1} parent=1 // pred_check
      _
    $region15: #{feedforward_nn.1} parent=1 // pred_check_branch
      %21 = sbr.rel (0) target = $region17
    $region16: #{feedforward_nn.1} parent=1 // pred_region
      %s23 = ssub.s32 1024, 1024
      %24 = vsyncadd [#allocation3], %s23
      %s25 = sshll.u32 [#allocation2], 4
      %s26 = int_to_ptr.vmem [resolvable:$true] %s25
      %31 = dma.hbm_to_vmem [thread:$0]  %s3, 1024, %s26, [#allocation3], 64, 64, 4
    $region17: #{feedforward_nn.1} parent=1 // pred_fallthru
      _
    // Predicated region
    $region18: #{feedforward_nn.1} parent=1 // pred_check
      _
    $region19: #{feedforward_nn.1} parent=1 // pred_check_branch
      %33 = sbr.rel (0) target = $region21
    $region20: #{feedforward_nn.1} parent=1 // pred_region
      _
    $region21: #{feedforward_nn.1} parent=1 // pred_fallthru
      _
    // Predicated region
    $region22: #{feedforward_nn.1} parent=1 // pred_check
      _
    $region23: #{feedforward_nn.1} parent=1 // pred_check_branch
      %35 = sbr.rel (0) target = $region25
    $region24: #{feedforward_nn.1} parent=1 // pred_region
      %s37 = ssub.s32 1024, 1024
      %38 = vsyncadd [#allocation5], %s37
      %s39 = sshll.u32 [#allocation4], 4
      %s40 = int_to_ptr.vmem [resolvable:$true] %s39
      %45 = dma.hbm_to_vmem [thread:$0]  %s5, 1024, %s40, [#allocation5], 64, 64, 4
    $region25: #{feedforward_nn.1} parent=1 // pred_fallthru
      _
    // Predicated region
    $region26: #{feedforward_nn.1} parent=1 // pred_check
      _
    $region27: #{feedforward_nn.1} parent=1 // pred_check_branch
      %47 = sbr.rel (0) target = $region29
    $region28: #{feedforward_nn.1} parent=1 // pred_region
      _
    $region29: #{feedforward_nn.1} parent=1 // pred_fallthru
      _
    // Predicated region
    $region30: #{feedforward_nn.1} parent=1 // pred_check
      _
    $region31: #{feedforward_nn.1} parent=1 // pred_check_branch
      %49 = sbr.rel (0) target = $region33
    $region32: #{feedforward_nn.1} parent=1 // pred_region
      %50 = dma.done [#allocation3], 1024
    $region33: #{feedforward_nn.1} parent=1 // pred_fallthru
      _
    // Predicated region
    $region34: #{feedforward_nn.1} parent=1 // pred_check
      _
    $region35: #{feedforward_nn.1} parent=1 // pred_check_branch
      %52 = sbr.rel (0) target = $region37
    $region36: #{feedforward_nn.1} parent=1 // pred_region
      %53 = dma.done [#allocation5], 1024
    $region37: #{feedforward_nn.1} parent=1 // pred_fallthru
      _
    %v55 = vld [vmem:[%s0] sm:$0xff]
    %v56 = vpack.c.bf16 %v55, %v55
    %v57 = vld [vmem:[%s1] sm:$0xf]
    %v58 = vld [vmem:[%s1 + $0x4] sm:$0xf]
    %v59 = vld [vmem:[%s2] sm:$0x1]
    %v61 = vlaneseq
    %v62 = vshrl.u32 %v61, 7
    %v63 = vsub.s32 0, %v62
    %v64 = vrot.slane %v59, %v63
    %v68 = vunpack.c.l.b16 %v57
    %v69 = vunpack.c.l.b16 %v58
    %v70 = vpack.c.b16 %v69, %v68
    %vm72 = vcmask 130048
    %v74 = vsel %vm72, %v56, 0
    %76 = vmatprep.subr.bf16.mxu0 0
    %77 = vmatpush1.bf16.msra.mxu0 0
    %78 = vmatprep.subr.bf16.mxu0 0
    %79 = vmatpush1.bf16.msra.mxu0 0
    %80 = vmatprep.subr.bf16.mxu0 0
    %81 = vmatpush1.bf16.msra.mxu0 0
    %82 = vmatprep.subr.bf16.mxu0 0
    %83 = vmatpush1.bf16.msra.mxu0 0
    %84 = vmatprep.subr.bf16.mxu0 0
    %85 = vmatpush1.bf16.msra.mxu0 0
    %86 = vmatprep.subr.bf16.mxu0 0
    %87 = vmatpush1.bf16.msra.mxu0 0
    %88 = vmatprep.subr.bf16.mxu0 0
    %89 = vmatpush1.bf16.msra.mxu0 0
    %90 = vmatprep.subr.bf16.mxu0 0
    %91 = vmatpush1.bf16.msra.mxu0 %v70
    %92 = vmatprep.subr.bf16.mxu0 0
    %93 = vmatpush2.bf16.msra.mxu0 0
    %94 = vmatprep.subr.bf16.mxu0 0
    %95 = vmatpush2.bf16.msra.mxu0 0
    %96 = vmatprep.subr.bf16.mxu0 0
    %97 = vmatpush2.bf16.msra.mxu0 0
    %98 = vmatprep.subr.bf16.mxu0 0
    %99 = vmatpush2.bf16.msra.mxu0 0
    %100 = vmatprep.subr.bf16.mxu0 0
    %101 = vmatpush2.bf16.msra.mxu0 0
    %102 = vmatprep.subr.bf16.mxu0 0
    %103 = vmatpush2.bf16.msra.mxu0 0
    %104 = vmatprep.subr.bf16.mxu0 0
    %105 = vmatpush2.bf16.msra.mxu0 0
    %106 = vmatprep.subr.bf16.mxu0 0
    %107 = vmatpush2.bf16.msra.mxu0 0
    %108 = vmatprep.mubr.bf16.mxu0 0
    %109 = vmatmul.mubr.bf16.gmra.mxu0 %v74
    %v110 = vpop.f32.mrf.mxu0
    %v111 = vadd.f32 %v64, %v110
    %v112 = vpop.f32.mrf.mxu0
    %v113 = vpop.f32.mrf.mxu0
    %v114 = vpop.f32.mrf.mxu0
    %115 = vdwg.mxu0
    %v116 = vxor.u32 %v111, 2147483648
    %v117 = vmul.f32 %v116, 1.442695
    %v118 = vpow.pop %v117
    %v119 = vadd.f32 %v118, 1.0
    %v120 = vrcp.pop %v119
    %v121 = vmul.f32 1.0, %v120
    %v122 = vpack.c.bf16 %v121, %v121
    %v123 = vld [vmem:[#allocation2] sm:$0xf]
    %v124 = vld [vmem:[#allocation2 + $0x4] sm:$0xf]
    %v125 = vld [vmem:[#allocation2 + $0x8] sm:$0xf]
    %v126 = vld [vmem:[#allocation2 + $0xc] sm:$0xf]
    %v127 = vld [vmem:[#allocation2 + $0x10] sm:$0xf]
    %v128 = vld [vmem:[#allocation2 + $0x14] sm:$0xf]
    %v129 = vld [vmem:[#allocation2 + $0x18] sm:$0xf]
    %v130 = vld [vmem:[#allocation2 + $0x1c] sm:$0xf]
    %v131 = vld [vmem:[#allocation2 + $0x20] sm:$0xf]
    %v132 = vld [vmem:[#allocation2 + $0x24] sm:$0xf]
    %v133 = vld [vmem:[#allocation2 + $0x28] sm:$0xf]
    %v134 = vld [vmem:[#allocation2 + $0x2c] sm:$0xf]
    %v135 = vld [vmem:[#allocation2 + $0x30] sm:$0xf]
    %v136 = vld [vmem:[#allocation2 + $0x34] sm:$0xf]
    %v137 = vld [vmem:[#allocation2 + $0x38] sm:$0xf]
    %v138 = vld [vmem:[#allocation2 + $0x3c] sm:$0xf]
    %v139 = vld [vmem:[%s4] sm:$0x1]
    %v141 = vlaneseq
    %v142 = vshrl.u32 %v141, 7
    %v143 = vsub.s32 0, %v142
    %v144 = vrot.slane %v139, %v143
    %v162 = vunpack.c.l.b16 %v123
    %v163 = vunpack.c.l.b16 %v124
    %v164 = vunpack.c.l.b16 %v125
    %v165 = vunpack.c.l.b16 %v126
    %v166 = vunpack.c.l.b16 %v127
    %v167 = vunpack.c.l.b16 %v128
    %v168 = vunpack.c.l.b16 %v129
    %v169 = vunpack.c.l.b16 %v130
    %v170 = vunpack.c.l.b16 %v131
    %v171 = vunpack.c.l.b16 %v132
    %v172 = vunpack.c.l.b16 %v133
    %v173 = vunpack.c.l.b16 %v134
    %v174 = vunpack.c.l.b16 %v135
    %v175 = vunpack.c.l.b16 %v136
    %v176 = vunpack.c.l.b16 %v137
    %v177 = vunpack.c.l.b16 %v138
    %v178 = vpack.c.b16 %v163, %v162
    %v179 = vpack.c.b16 %v165, %v164
    %v180 = vpack.c.b16 %v167, %v166
    %v181 = vpack.c.b16 %v169, %v168
    %v182 = vpack.c.b16 %v171, %v170
    %v183 = vpack.c.b16 %v173, %v172
    %v184 = vpack.c.b16 %v175, %v174
    %v185 = vpack.c.b16 %v177, %v176
    %194 = vmatprep.subr.bf16.mxu0 0
    %195 = vmatpush1.bf16.msra.mxu0 %v185
    %196 = vmatprep.subr.bf16.mxu0 0
    %197 = vmatpush1.bf16.msra.mxu0 %v184
    %198 = vmatprep.subr.bf16.mxu0 0
    %199 = vmatpush1.bf16.msra.mxu0 %v183
    %200 = vmatprep.subr.bf16.mxu0 0
    %201 = vmatpush1.bf16.msra.mxu0 %v182
    %202 = vmatprep.subr.bf16.mxu0 0
    %203 = vmatpush1.bf16.msra.mxu0 %v181
    %204 = vmatprep.subr.bf16.mxu0 0
    %205 = vmatpush1.bf16.msra.mxu0 %v180
    %206 = vmatprep.subr.bf16.mxu0 0
    %207 = vmatpush1.bf16.msra.mxu0 %v179
    %208 = vmatprep.subr.bf16.mxu0 0
    %209 = vmatpush1.bf16.msra.mxu0 %v178
    %210 = vmatprep.subr.bf16.mxu0 0
    %211 = vmatpush2.bf16.msra.mxu0 0
    %212 = vmatprep.subr.bf16.mxu0 0
    %213 = vmatpush2.bf16.msra.mxu0 0
    %214 = vmatprep.subr.bf16.mxu0 0
    %215 = vmatpush2.bf16.msra.mxu0 0
    %216 = vmatprep.subr.bf16.mxu0 0
    %217 = vmatpush2.bf16.msra.mxu0 0
    %218 = vmatprep.subr.bf16.mxu0 0
    %219 = vmatpush2.bf16.msra.mxu0 0
    %220 = vmatprep.subr.bf16.mxu0 0
    %221 = vmatpush2.bf16.msra.mxu0 0
    %222 = vmatprep.subr.bf16.mxu0 0
    %223 = vmatpush2.bf16.msra.mxu0 0
    %224 = vmatprep.subr.bf16.mxu0 0
    %225 = vmatpush2.bf16.msra.mxu0 0
    %226 = vmatprep.mubr.bf16.mxu0 0
    %227 = vmatmul.mubr.bf16.gmra.mxu0 %v122
    %v228 = vpop.f32.mrf.mxu0
    %v229 = vadd.f32 %v144, %v228
    %v230 = vpop.f32.mrf.mxu0
    %v231 = vpop.f32.mrf.mxu0
    %v232 = vpop.f32.mrf.mxu0
    %233 = vdwg.mxu0
    %v234 = vxor.u32 %v229, 2147483648
    %v235 = vmul.f32 %v234, 1.442695
    %v236 = vpow.pop %v235
    %v237 = vadd.f32 %v236, 1.0
    %v238 = vrcp.pop %v237
    %v239 = vmul.f32 1.0, %v238
    %v240 = vpack.c.bf16 %v239, %v239
    %v241 = vld [vmem:[#allocation4] sm:$0xf]
    %v242 = vld [vmem:[#allocation4 + $0x4] sm:$0xf]
    %v243 = vld [vmem:[#allocation4 + $0x8] sm:$0xf]
    %v244 = vld [vmem:[#allocation4 + $0xc] sm:$0xf]
    %v245 = vld [vmem:[#allocation4 + $0x10] sm:$0xf]
    %v246 = vld [vmem:[#allocation4 + $0x14] sm:$0xf]
    %v247 = vld [vmem:[#allocation4 + $0x18] sm:$0xf]
    %v248 = vld [vmem:[#allocation4 + $0x1c] sm:$0xf]
    %v249 = vld [vmem:[#allocation4 + $0x20] sm:$0xf]
    %v250 = vld [vmem:[#allocation4 + $0x24] sm:$0xf]
    %v251 = vld [vmem:[#allocation4 + $0x28] sm:$0xf]
    %v252 = vld [vmem:[#allocation4 + $0x2c] sm:$0xf]
    %v253 = vld [vmem:[#allocation4 + $0x30] sm:$0xf]
    %v254 = vld [vmem:[#allocation4 + $0x34] sm:$0xf]
    %v255 = vld [vmem:[#allocation4 + $0x38] sm:$0xf]
    %v256 = vld [vmem:[#allocation4 + $0x3c] sm:$0xf]
    %v257 = vld [vmem:[%s6] sm:$0x1]
    %v259 = vlaneseq
    %v260 = vshrl.u32 %v259, 7
    %v261 = vsub.s32 0, %v260
    %v262 = vrot.slane %v257, %v261
    %v280 = vunpack.c.l.b16 %v241
    %v281 = vunpack.c.l.b16 %v242
    %v282 = vunpack.c.l.b16 %v243
    %v283 = vunpack.c.l.b16 %v244
    %v284 = vunpack.c.l.b16 %v245
    %v285 = vunpack.c.l.b16 %v246
    %v286 = vunpack.c.l.b16 %v247
    %v287 = vunpack.c.l.b16 %v248
    %v288 = vunpack.c.l.b16 %v249
    %v289 = vunpack.c.l.b16 %v250
    %v290 = vunpack.c.l.b16 %v251
    %v291 = vunpack.c.l.b16 %v252
    %v292 = vunpack.c.l.b16 %v253
    %v293 = vunpack.c.l.b16 %v254
    %v294 = vunpack.c.l.b16 %v255
    %v295 = vunpack.c.l.b16 %v256
    %v296 = vpack.c.b16 %v281, %v280
    %v297 = vpack.c.b16 %v283, %v282
    %v298 = vpack.c.b16 %v285, %v284
    %v299 = vpack.c.b16 %v287, %v286
    %v300 = vpack.c.b16 %v289, %v288
    %v301 = vpack.c.b16 %v291, %v290
    %v302 = vpack.c.b16 %v293, %v292
    %v303 = vpack.c.b16 %v295, %v294
    %312 = vmatprep.subr.bf16.mxu0 0
    %313 = vmatpush1.bf16.msra.mxu0 %v303
    %314 = vmatprep.subr.bf16.mxu0 0
    %315 = vmatpush1.bf16.msra.mxu0 %v302
    %316 = vmatprep.subr.bf16.mxu0 0
    %317 = vmatpush1.bf16.msra.mxu0 %v301
    %318 = vmatprep.subr.bf16.mxu0 0
    %319 = vmatpush1.bf16.msra.mxu0 %v300
    %320 = vmatprep.subr.bf16.mxu0 0
    %321 = vmatpush1.bf16.msra.mxu0 %v299
    %322 = vmatprep.subr.bf16.mxu0 0
    %323 = vmatpush1.bf16.msra.mxu0 %v298
    %324 = vmatprep.subr.bf16.mxu0 0
    %325 = vmatpush1.bf16.msra.mxu0 %v297
    %326 = vmatprep.subr.bf16.mxu0 0
    %327 = vmatpush1.bf16.msra.mxu0 %v296
    %328 = vmatprep.subr.bf16.mxu0 0
    %329 = vmatpush2.bf16.msra.mxu0 0
    %330 = vmatprep.subr.bf16.mxu0 0
    %331 = vmatpush2.bf16.msra.mxu0 0
    %332 = vmatprep.subr.bf16.mxu0 0
    %333 = vmatpush2.bf16.msra.mxu0 0
    %334 = vmatprep.subr.bf16.mxu0 0
    %335 = vmatpush2.bf16.msra.mxu0 0
    %336 = vmatprep.subr.bf16.mxu0 0
    %337 = vmatpush2.bf16.msra.mxu0 0
    %338 = vmatprep.subr.bf16.mxu0 0
    %339 = vmatpush2.bf16.msra.mxu0 0
    %340 = vmatprep.subr.bf16.mxu0 0
    %341 = vmatpush2.bf16.msra.mxu0 0
    %342 = vmatprep.subr.bf16.mxu0 0
    %343 = vmatpush2.bf16.msra.mxu0 0
    %344 = vmatprep.mubr.bf16.mxu0 0
    %345 = vmatmul.mubr.bf16.gmra.mxu0 %v240
    %v346 = vpop.f32.mrf.mxu0
    %v347 = vadd.f32 %v262, %v346
    %v348 = vpop.f32.mrf.mxu0
    %v349 = vpop.f32.mrf.mxu0
    %v350 = vpop.f32.mrf.mxu0
    %351 = vdwg.mxu0
    %v352 = vmul.f32 %v347, 1.442695
    %v353 = vpow.pop %v352
    %v354 = vlaneseq
    %v355 = vand.u32 %v354, 127
    %vm356 = vcmp.lt.s32.totalorder %v355, 64
    %v357 = vsel %vm356, %v353, 0.0
    %358 = vadd.xlane.f32.xlu0 %v357
    %v359 = vpop.xlane.xlu0 %358
    %v360 = vsel %vm356, 0.0, %v353
    %361 = vadd.xlane.f32.xlu0 %v360
    %v362 = vpop.xlane.xlu0 %361
    %v363 = vsel %vm356, %v359, %v362
    %v364 = vrcp.pop %v363
    %v365 = vmul.f32 %v353, %v364
    %v366 = vpack.c.bf16 %v365, %v365
    %367 = vst [vmem:[%s7] sm:$0xf] %v366
    // Predicated region
    $region38: #{feedforward_nn.1} parent=1 // pred_check
      _
    $region39: #{feedforward_nn.1} parent=1 // pred_check_branch
      %369 = sbr.rel (0) target = $region41
    $region40: #{feedforward_nn.1} parent=1 // pred_region
      _
    $region41: #{feedforward_nn.1} parent=1 // pred_fallthru
      _
    // Predicated region
    $region42: #{feedforward_nn.1} parent=1 // pred_check
      _
    $region43: #{feedforward_nn.1} parent=1 // pred_check_branch
      %371 = sbr.rel (0) target = $region45
    $region44: #{feedforward_nn.1} parent=1 // pred_region
      _
    $region45: #{feedforward_nn.1} parent=1 // pred_fallthru
      _
    %372 = vsyncpa [#allocation3], 1
    %373 = vsyncpa [#allocation5], 1

</llo_original>
